<compile_context>
chip_gen: v7x
topology: tpu7x:2x2x1
jax: 0.10.0
libtpu: 0.0.40
codegen_flags: <defaults>
</compile_context>

<pallas_src>
import jax
import jax.numpy as jnp
from jax import lax
from jax.experimental import pallas as pl
from jax.experimental.pallas import tpu as pltpu

LRELU_SLOPE = 0.1


def get_padding(kernel_size, dilation=1):
    return int((kernel_size * dilation - dilation) / 2)


def _round_up(x, m):
    return ((x + m - 1) // m) * m


def _pad_to(a, axis, size):
    if a.shape[axis] >= size:
        return a
    pads = [(0, 0)] * a.ndim
    pads[axis] = (0, size - a.shape[axis])
    return jnp.pad(a, pads)


def conv_period_layer(x, w, bias, stride, pad, apply_lrelu, *,
                      compute_dtype=jnp.bfloat16, th_max=128):
    """Conv2d with kernel (K,1), stride (stride,1), zero pad (pad,0) + optional leaky-relu.

    x    : (BW, H, Cin)   -- period folded into batch; conv slides along H only.
    w    : (K, Cin, Cout) -- Cout should be a multiple of 128 (lane-dense stores).
    bias : (Cout,)
    returns (BW, H_out, Cout) in `compute_dtype`.
    """
    BW, H, Cin = x.shape
    K, wcin, Cout = w.shape
    assert wcin == Cin, (wcin, Cin)
    H_out = (H + 2 * pad - K) // stride + 1
    Kc = K * Cin                                   # contraction width (MXU K dim)

    # Output-row tiling (MXU M dim).  th_max=128 is safe on all generations;
    # raise to 256 on v6e/v7x for better 2x256^2 MXU cadence.
    if H_out <= th_max:
        TH, n_h, H_rows = H_out, 1, H_out          # full-dim block, no overhang
    else:
        TH = th_max
        n_h = pl.cdiv(H_out, TH)
        H_rows = n_h * TH                          # im2col rows: in-bounds reads;
                                                   # the output overhang is clipped.

    # im2col along H in the wrapper (XLA): row h -> concat_k x_pad[h*stride+k, :].
    # Keeps the kernel a single aligned (TH,Kc)@(Kc,Cout) matmul and removes the
    # per-tap unaligned sublane slices (which forced shifted VMEM copies).
    x = x.astype(compute_dtype)
    Hp = (H_rows - 1) * stride + K
    x_pad = jnp.pad(x, ((0, 0), (pad, max(0, Hp - pad - H)), (0, 0)))
    taps = [x_pad[:, k:k + (H_rows - 1) * stride + 1:stride, :] for k in range(K)]
    xg = jnp.stack(taps, axis=2).reshape(BW, H_rows, Kc)

    wg = w.reshape(Kc, Cout).astype(compute_dtype)   # k-major, matches im2col order
    b2 = bias.reshape(1, Cout).astype(jnp.float32)   # bias / epilogue stay in f32

    def kernel(x_ref, w_ref, b_ref, o_ref):
        # x_ref: (TH, Kc)  w_ref: (Kc, Cout)  b_ref: (1, Cout)  o_ref: (TH, Cout)
        acc = jnp.dot(x_ref[...], w_ref[...], preferred_element_type=jnp.float32)
        y = acc + b_ref[...]
        if apply_lrelu:
            y = jnp.where(y >= 0, y, LRELU_SLOPE * y)
        o_ref[...] = y.astype(o_ref.dtype)

    elt = jnp.dtype(compute_dtype).itemsize
    # Double-buffered tiles: x, weight (constant index -> fetched once), out, bias.
    vmem_need = 2 * (TH * Kc * elt + Kc * Cout * elt + TH * Cout * elt + Cout * 4)
    vmem_limit = int(min(max(vmem_need + (8 << 20), 32 << 20), 64 << 20))

    cost = pl.CostEstimate(
        flops=2 * BW * n_h * TH * Kc * Cout,
        transcendentals=0,
        bytes_accessed=(BW * H_rows * Kc + Kc * Cout + BW * H_out * Cout) * elt
                       + Cout * 4)

    out = pl.pallas_call(
        kernel,
        out_shape=jax.ShapeDtypeStruct((BW, H_out, Cout), compute_dtype),
        grid_spec=pltpu.PrefetchScalarGridSpec(
            num_scalar_prefetch=0,
            # BW outermost: the megacore (v7x) split lands on an axis that always
            # has work; both axes write independent output blocks -> "parallel".
            grid=(BW, n_h),
            in_specs=[
                pl.BlockSpec((pl.Squeezed(), TH, Kc), lambda bw, hi: (bw, hi, 0)),
                # Constant index map -> weight DMA'd once, VMEM-resident for the
                # whole (bw, h) sweep; no activation re-fetch across channels.
                pl.BlockSpec((Kc, Cout), lambda bw, hi: (0, 0)),
                pl.BlockSpec((1, Cout), lambda bw, hi: (0, 0)),
            ],
            out_specs=pl.BlockSpec((pl.Squeezed(), TH, Cout),
                                   lambda bw, hi: (bw, hi, 0)),
        ),
        compiler_params=pltpu.CompilerParams(
            dimension_semantics=("parallel", "parallel"),
            vmem_limit_bytes=vmem_limit),
        cost_estimate=cost,
    )(xg, wg, b2)
    return out


def init_params(key, kernel_size=5):
    """Deterministic synthetic weights (weight_norm at init == plain conv)."""
    chans = [(1, 32), (32, 128), (128, 512), (512, 1024), (1024, 1024)]
    params = {"convs": [], "conv_post": None}
    for cin, cout in chans:
        key, k1, k2 = jax.random.split(key, 3)
        scale = 1.0 / jnp.sqrt(cin * kernel_size)
        w = jax.random.normal(k1, (kernel_size, cin, cout), jnp.float32) * scale
        bi = jax.random.normal(k2, (cout,), jnp.float32) * 0.01
        params["convs"].append((w, bi))
    key, k1, k2 = jax.random.split(key, 3)
    w = jax.random.normal(k1, (3, 1024, 1), jnp.float32) * (1.0 / jnp.sqrt(1024 * 3))
    bi = jax.random.normal(k2, (1,), jnp.float32) * 0.01
    params["conv_post"] = (w, bi)
    return params


def _to_nchw(xk, b, period):
    """(B*period, H, C) kernel layout -> torch NCHW (B, C, H, period)."""
    bw, h, c = xk.shape
    return jnp.transpose(xk.reshape(b, period, h, c), (0, 3, 2, 1))


def discriminator_p_forward(x, params, period, kernel_size=5, stride=3,
                            compute_dtype=jnp.bfloat16):
    b, c, t = x.shape
    if t % period != 0:
        n_pad = period - t % period
        x = jnp.pad(x, ((0, 0), (0, 0), (0, n_pad)), mode="reflect")
        t = t + n_pad
    H = t // period
    # torch view (b, c, H, period)  ->  kernel layout (b*period, H, c)
    xk = jnp.transpose(x.reshape(b, c, H, period), (0, 3, 2, 1)).reshape(b * period, H, c)
    pad = get_padding(kernel_size, 1)

    fmap = []
    for i, (w, bias) in enumerate(params["convs"]):
        s = stride if i < 4 else 1                  # last conv in the stack: stride 1
        cout = w.shape[2]
        cout_p = max(_round_up(cout, 128), 128)
        # Pad Cin to the (possibly lane-padded) channel count carried in xk and
        # Cout to a multiple of 128 -> 128-lane dense stores. Padded output
        # channels are exact zeros (zero weights + zero bias, lrelu(0)=0), so
        # they never perturb the next layer.
        w = _pad_to(_pad_to(w, 1, xk.shape[-1]), 2, cout_p)
        bias = _pad_to(bias, 0, cout_p)
        xk = conv_period_layer(xk, w, bias, s, pad, apply_lrelu=True,
                               compute_dtype=compute_dtype)
        fmap.append(_to_nchw(xk[..., :cout], b, period))   # report fmaps in NCHW

    w, bias = params["conv_post"]
    cout = w.shape[2]                               # 1 -> padded to 128 lanes
    w = _pad_to(_pad_to(w, 1, xk.shape[-1]), 2, 128)
    bias = _pad_to(bias, 0, 128)
    xk = conv_period_layer(xk, w, bias, 1, get_padding(3, 1), apply_lrelu=False,
                           compute_dtype=compute_dtype)
    xk = xk[..., :cout]
    x_nchw = _to_nchw(xk, b, period)
    fmap.append(x_nchw)
    return x_nchw.reshape(b, -1), fmap              # torch.flatten(x, 1, -1)


def ref_forward(x, params, period, kernel_size=5, stride=3):
    """Pure-JAX reference mirroring the PyTorch module (NCHW convs, f32)."""
    b, c, t = x.shape
    if t % period != 0:
        n_pad = period - t % period
        x = jnp.pad(x, ((0, 0), (0, 0), (0, n_pad)), mode="reflect")
        t = t + n_pad
    x = x.reshape(b, c, t // period, period)
    pad = get_padding(kernel_size, 1)

    def conv(x, w, bias, s, p):
        w_t = jnp.transpose(w, (2, 1, 0))[..., None]  # (Cout, Cin, K, 1) OIHW
        y = lax.conv_general_dilated(x, w_t, window_strides=(s, 1),
                                     padding=((p, p), (0, 0)),
                                     dimension_numbers=("NCHW", "OIHW", "NCHW"))
        return y + bias.reshape(1, -1, 1, 1)

    fmap = []
    for i, (w, bias) in enumerate(params["convs"]):
        s = stride if i < 4 else 1
        x = conv(x, w, bias, s, pad)
        x = jnp.where(x >= 0, x, LRELU_SLOPE * x)
        fmap.append(x)
    w, bias = params["conv_post"]
    x = conv(x, w, bias, 1, get_padding(3, 1))
    fmap.append(x)
    return x.reshape(b, -1), fmap


def _norm_err(a, r):
    a = jnp.asarray(a, jnp.float32)
    r = jnp.asarray(r, jnp.float32)
    return float(jnp.max(jnp.abs(a - r)) / jnp.maximum(jnp.max(jnp.abs(r)), 1e-3))


if __name__ == "__main__":
    key = jax.random.PRNGKey(0)
    kx, kp = jax.random.split(key)
    params = init_params(kp)

    # --- Config A: f32 operands, tiny shapes -> exact-semantics check vs torch-style ref.
    xA = jax.random.normal(kx, (2, 1, 47), jnp.float32)   # t % period != 0 -> reflect pad
    outA, fmapA = discriminator_p_forward(xA, params, period=3,
                                          compute_dtype=jnp.float32)
    outA = jax.block_until_ready(outA)
    refA, ref_fmapA = ref_forward(xA, params, period=3)
    assert outA.shape == refA.shape, (outA.shape, refA.shape)
    assert jnp.allclose(outA, refA, atol=2e-3, rtol=2e-3)
    for a, r in zip(fmapA, ref_fmapA):
        assert a.shape == r.shape, (a.shape, r.shape)
        assert jnp.allclose(a, r, atol=2e-3, rtol=2e-3)

    # --- Config B: bf16 MXU fast path, larger T -> exercises H tiling + clipped last
    # block. bf16 operands with f32 accumulation: compare with a normalized max-error
    # bound (exactness is already established by the f32 config above).
    kx2 = jax.random.split(kx)[0]
    xB = jax.random.normal(kx2, (2, 1, 1499), jnp.float32)
    outB, fmapB = discriminator_p_forward(xB, params, period=2,
                                          compute_dtype=jnp.bfloat16)
    outB = jax.block_until_ready(outB)
    refB, ref_fmapB = ref_forward(xB, params, period=2)
    assert outB.shape == refB.shape, (outB.shape, refB.shape)
    assert _norm_err(outB, refB) < 8e-2
    for a, r in zip(fmapB, ref_fmapB):
        assert a.shape == r.shape, (a.shape, r.shape)
        assert _norm_err(a, r) < 8e-2

    print("KERNEL_OK")
</pallas_src>

<mosaic_0001>
module attributes {stable_mosaic.version = 11 : i64} {
  func.func @kernel(%arg0: i32, %arg1: i32, %arg2: memref<1x6x5xf32, #tpu.memory_space<vmem>>, %arg3: memref<5x128xf32, #tpu.memory_space<vmem>>, %arg4: memref<1x128xf32, #tpu.memory_space<vmem>>, %arg5: memref<1x6x128xf32, #tpu.memory_space<vmem>>) attributes {dimension_semantics = [#tpu.dimension_semantics<parallel>, #tpu.dimension_semantics<parallel>], iteration_bounds = array<i64: 6, 1>, scalar_prefetch = 0 : i64, scratch_operands = 0 : i64, tpu.core_type = #tpu.core_type<tc>, window_params = [{transform_indices = @transform_0, window_bounds = array<i64: 1, 6, 5>}, {pipeline_mode = #tpu.pipeline_mode<synchronous>, transform_indices = @transform_1, window_bounds = array<i64: 5, 128>}, {pipeline_mode = #tpu.pipeline_mode<synchronous>, transform_indices = @transform_2, window_bounds = array<i64: 1, 128>}, {transform_indices = @transform_3, window_bounds = array<i64: 1, 6, 128>}]} {
    %c0 = arith.constant 0 : index
    %c0_0 = arith.constant 0 : index
    %c0_1 = arith.constant 0 : index
    %0 = vector.load %arg2[%c0, %c0_0, %c0_1] : memref<1x6x5xf32, #tpu.memory_space<vmem>>, vector<1x6x5xf32>
    %1 = vector.shape_cast %0 : vector<1x6x5xf32> to vector<6x5xf32>
    %c0_2 = arith.constant 0 : index
    %c0_3 = arith.constant 0 : index
    %2 = vector.load %arg3[%c0_2, %c0_3] : memref<5x128xf32, #tpu.memory_space<vmem>>, vector<5x128xf32>
    %cst = arith.constant dense<0.000000e+00> : vector<6x128xf32>
    %3 = tpu.matmul %1, %2, %cst {dimension_numbers = #tpu.dot_dimension_numbers<[1], [0], [0], [1], [0, 0, 1, 1], [], []>} : vector<6x5xf32>, vector<5x128xf32>, vector<6x128xf32> -> vector<6x128xf32>
    %c0_4 = arith.constant 0 : index
    %c0_5 = arith.constant 0 : index
    %4 = vector.load %arg4[%c0_4, %c0_5] : memref<1x128xf32, #tpu.memory_space<vmem>>, vector<1x128xf32>
    %5 = vector.broadcast %4 : vector<1x128xf32> to vector<6x128xf32>
    %6 = arith.addf %3, %5 : vector<6x128xf32>
    %cst_6 = arith.constant 0.000000e+00 : f32
    %7 = vector.broadcast %cst_6 : f32 to vector<6x128xf32>
    %8 = arith.cmpf oge, %6, %7 : vector<6x128xf32>
    %cst_7 = arith.constant 1.000000e-01 : f32
    %9 = vector.broadcast %cst_7 : f32 to vector<6x128xf32>
    %10 = arith.mulf %9, %6 : vector<6x128xf32>
    %11 = arith.select %8, %6, %10 : vector<6x128xi1>, vector<6x128xf32>
    %c0_8 = arith.constant 0 : index
    %c0_9 = arith.constant 0 : index
    %c0_10 = arith.constant 0 : index
    %12 = vector.load %arg5[%c0_8, %c0_9, %c0_10] : memref<1x6x128xf32, #tpu.memory_space<vmem>>, vector<1x6x128xf32>
    %13 = vector.shape_cast %12 : vector<1x6x128xf32> to vector<6x128xf32>
    %14 = vector.shape_cast %11 : vector<6x128xf32> to vector<1x6x128xf32>
    tpu.vector_store %arg5[%c0_8, %c0_9, %c0_10], %14 {strides = array<i32>} : memref<1x6x128xf32, #tpu.memory_space<vmem>>, vector<1x6x128xf32>,
    return
  }
  func.func @transform_0(%arg0: i32, %arg1: i32) -> (i32, i32, i32) {
    %c0_i32 = arith.constant 0 : i32
    %c0_i32_0 = arith.constant 0 : i32
    return %arg0, %arg1, %c0_i32 : i32, i32, i32
  }
  func.func @transform_1(%arg0: i32, %arg1: i32) -> (i32, i32) {
    %c0_i32 = arith.constant 0 : i32
    %c0_i32_0 = arith.constant 0 : i32
    %c0_i32_1 = arith.constant 0 : i32
    return %c0_i32, %c0_i32_0 : i32, i32
  }
  func.func @transform_2(%arg0: i32, %arg1: i32) -> (i32, i32) {
    %c0_i32 = arith.constant 0 : i32
    %c0_i32_0 = arith.constant 0 : i32
    %c0_i32_1 = arith.constant 0 : i32
    return %c0_i32, %c0_i32_0 : i32, i32
  }
  func.func @transform_3(%arg0: i32, %arg1: i32) -> (i32, i32, i32) {
    %c0_i32 = arith.constant 0 : i32
    %c0_i32_0 = arith.constant 0 : i32
    return %arg0, %arg1, %c0_i32 : i32, i32, i32
  }
}

</mosaic_0001>

<llo_original>
// kernel: tpu_custom_call.1
$region0: #{tpu_custom_call.1}
  #allocation0 [shape = 'u32[]', space=smem, size = 0x4, offset = 0x4, fixed_abs, tag = 'smem constant byte address 0x4 - core index']
  #allocation1 [shape = 'u32[144,128]{1,0:T(1,128)}', space=vmem, size = 0x12000, scoped, tag = 'internal scratch']
  %s0 = inlined_call_operand.vmem [shape: f32[6,6,5], index: 0, kind: input, shape index: {}]
  %s1 = inlined_call_operand.vmem [shape: f32[5,128], index: 1, kind: input, shape index: {}]
  %s2 = inlined_call_operand.vmem [shape: f32[1,128], index: 2, kind: input, shape index: {}]
  %s3 = inlined_call_operand.hbm [shape: f32[6,6,128], index: 3, kind: output, shape index: {}]
  %s4 = sld [smem:[#allocation0]]
  $region45: #{tpu_custom_call.1} parent=0
    _
  %s6 = ssub.s32 1, %s4
  %s7 = scalar_select 0, %s6, %s4
  $region1: #{tpu_custom_call.1} parent=0
    #allocation2 [shape = 'u8[8192]{0}', space=vmem, size = 0x2000, scoped, tag = 'output window, operand 0']
    #allocation3 [shape = 's32[2]{0}', space=sflag, size = 0x8, scoped, tag = 'scoped memory for tpu_custom_call.1']
    %8 = vsyncpa [#allocation3], 0
    %s9 = scalar_lea.sflag [#allocation3], 1
    %10 = vsyncpa %s9, 0
    loop: start=0, step=1, limit=8
    $region2: #{tpu_custom_call.1} parent=1 // loop_pre_header
      _
    $region3: #{tpu_custom_call.1} parent=1 // loop_header
      %s12 = sphi 0, %s16
      %p13 = scmp.ge.s32.totalorder %s12, 8
      %s19 = sphi 0, %s31
      %s20 = sphi 0, %s27
      %s21 = sphi 0, %s19
      %s22 = sphi 0, %s20
      %s23 = sphi 0, %s21
      %s24 = sphi 0, %s22
      %s36 = sphi 0, %s38
      %s39 = sphi 0, %s36
      %s40 = sphi 0, %s39
      %s56 = sphi 0, %s40
      %s60 = sphi 0, %s60
      %s62 = sphi 0, %s60
      %s63 = sphi 0, %s62
      %s77 = sphi 0, %s63
      %s81 = sphi 0, %s81
      %s83 = sphi 0, %s81
      %s84 = sphi 0, %s83
      %s98 = sphi 0, %s84
      %s106 = sphi 0, %s108
      %s109 = sphi 0, %s106
      %s110 = sphi 0, %s109
      %s126 = sphi 0, %s110
    $region4: #{tpu_custom_call.1} parent=1 // loop_header_branch
      %15 = sbr.rel (%p13) target = $region8
    $region5: #{tpu_custom_call.1} parent=1 // loop_body
      %s17 = ssub.s32 %s12, 1
      %s18 = ssub.s32 %s12, 2
      %s25 = sadd.s32 1, %s20
      %p26 = scmp.ge.s32.totalorder %s25, 1
      %s27 = scalar_select %p26, 0, %s25
      %s28 = sadd.s32 1, %s19
      %s29 = scalar_select %p26, %s28, %s19
      %p30 = scmp.ge.s32.totalorder %s29, 6
      %s31 = scalar_select %p30, 0, %s29
      %s32 = ssub.s32 %s19, %s31
      %s33 = ssub.s32 %s20, %s27
      %s34 = sor.u32 %s32, %s33
      %p35 = scmp.eq.s32.totalorder %s34, 0
      %s37 = sadd.s32 %s36, 1
      %s38 = scalar_select %p35, %s36, %s37
      %p41 = pneg %p35
      %p42 = scmp.eq.s32.totalorder %s12, 5
      %p43 = por %p41, %p42
      %p44 = scmp.ne.s32.totalorder %s36, %s39
      %p45 = scmp.eq.s32.totalorder %s12, 0
      %p46 = por %p44, %p45
      %p47 = scmp.ne.s32.totalorder %s36, %s39
      %p48 = scmp.eq.s32.totalorder %s17, 5
      %p49 = por %p47, %p48
      %p50 = scmp.ne.s32.totalorder %s39, %s40
      %p51 = scmp.eq.s32.totalorder %s17, 0
      %p52 = por %p50, %p51
      %p53 = scmp.ne.s32.totalorder %s39, %s40
      %p54 = scmp.eq.s32.totalorder %s18, 5
      %p55 = por %p53, %p54
      %p57 = scmp.ne.s32.totalorder %s40, %s56
      %p58 = scmp.eq.s32.totalorder %s18, 0
      %p59 = por %p57, %p58
      %s61 = sadd.s32 %s60, 1
      %p64 = scmp.eq.s32.totalorder %s12, 5
      %p65 = scmp.ne.s32.totalorder %s60, %s62
      %p66 = scmp.eq.s32.totalorder %s12, 0
      %p67 = por %p65, %p66
      %p68 = scmp.ne.s32.totalorder %s60, %s62
      %p69 = scmp.eq.s32.totalorder %s17, 5
      %p70 = por %p68, %p69
      %p71 = scmp.ne.s32.totalorder %s62, %s63
      %p72 = scmp.eq.s32.totalorder %s17, 0
      %p73 = por %p71, %p72
      %p74 = scmp.ne.s32.totalorder %s62, %s63
      %p75 = scmp.eq.s32.totalorder %s18, 5
      %p76 = por %p74, %p75
      %p78 = scmp.ne.s32.totalorder %s63, %s77
      %p79 = scmp.eq.s32.totalorder %s18, 0
      %p80 = por %p78, %p79
      %s82 = sadd.s32 %s81, 1
      %p85 = scmp.eq.s32.totalorder %s12, 5
      %p86 = scmp.ne.s32.totalorder %s81, %s83
      %p87 = scmp.eq.s32.totalorder %s12, 0
      %p88 = por %p86, %p87
      %p89 = scmp.ne.s32.totalorder %s81, %s83
      %p90 = scmp.eq.s32.totalorder %s17, 5
      %p91 = por %p89, %p90
      %p92 = scmp.ne.s32.totalorder %s83, %s84
      %p93 = scmp.eq.s32.totalorder %s17, 0
      %p94 = por %p92, %p93
      %p95 = scmp.ne.s32.totalorder %s83, %s84
      %p96 = scmp.eq.s32.totalorder %s18, 5
      %p97 = por %p95, %p96
      %p99 = scmp.ne.s32.totalorder %s84, %s98
      %p100 = scmp.eq.s32.totalorder %s18, 0
      %p101 = por %p99, %p100
      %s102 = ssub.s32 %s19, %s31
      %s103 = ssub.s32 %s20, %s27
      %s104 = sor.u32 %s102, %s103
      %p105 = scmp.eq.s32.totalorder %s104, 0
      %s107 = sadd.s32 %s106, 1
      %s108 = scalar_select %p105, %s106, %s107
      %p111 = pneg %p105
      %p112 = scmp.eq.s32.totalorder %s12, 5
      %p113 = por %p111, %p112
      %p114 = scmp.ne.s32.totalorder %s106, %s109
      %p115 = scmp.eq.s32.totalorder %s12, 0
      %p116 = por %p114, %p115
      %p117 = scmp.ne.s32.totalorder %s106, %s109
      %p118 = scmp.eq.s32.totalorder %s17, 5
      %p119 = por %p117, %p118
      %p120 = scmp.ne.s32.totalorder %s109, %s110
      %p121 = scmp.eq.s32.totalorder %s17, 0
      %p122 = por %p120, %p121
      %p123 = scmp.ne.s32.totalorder %s109, %s110
      %p124 = scmp.eq.s32.totalorder %s18, 5
      %p125 = por %p123, %p124
      %p127 = scmp.ne.s32.totalorder %s110, %s126
      %p128 = scmp.eq.s32.totalorder %s18, 0
      %p129 = por %p127, %p128
      %p130 = scmp.le.s32.totalorder 1, %s12
      %p131 = scmp.lt.s32.totalorder %s12, 7
      %p132 = pnand %p130, %p131
      %p133 = pneg %p132
      // Predicated region
      $region9: #{tpu_custom_call.1} parent=5 // pred_check
        _
      $region10: #{tpu_custom_call.1} parent=5 // pred_check_branch
        %135 = sbr.rel (%p132) target = $region12
      $region11: #{tpu_custom_call.1} parent=5 // pred_region
        %s136 = ssub.s32 %s12, 1
        // Predicated region
        $region13: #{tpu_custom_call.1} parent=11 // pred_check
          %p137 = pneg %p73
        $region14: #{tpu_custom_call.1} parent=11 // pred_check_branch
          %139 = sbr.rel (%p137) target = $region16
        $region15: #{tpu_custom_call.1} parent=11 // pred_region
          _
        $region16: #{tpu_custom_call.1} parent=11 // pred_fallthru
          _
        // Predicated region
        $region17: #{tpu_custom_call.1} parent=11 // pred_check
          %p140 = pneg %p94
        $region18: #{tpu_custom_call.1} parent=11 // pred_check_branch
          %142 = sbr.rel (%p140) target = $region20
        $region19: #{tpu_custom_call.1} parent=11 // pred_region
          _
        $region20: #{tpu_custom_call.1} parent=11 // pred_fallthru
          _
      $region12: #{tpu_custom_call.1} parent=5 // pred_fallthru
        _
      %p143 = scmp.lt.s32.totalorder %s12, 6
      // Predicated region
      $region21: #{tpu_custom_call.1} parent=5 // pred_check
        %p144 = pneg %p143
      $region22: #{tpu_custom_call.1} parent=5 // pred_check_branch
        %146 = sbr.rel (%p144) target = $region24
      $region23: #{tpu_custom_call.1} parent=5 // pred_region
        // Predicated region
        $region25: #{tpu_custom_call.1} parent=23 // pred_check
          %p147 = pneg %p46
        $region26: #{tpu_custom_call.1} parent=23 // pred_check_branch
          %149 = sbr.rel (%p147) target = $region28
        $region27: #{tpu_custom_call.1} parent=23 // pred_region
          %p150 = scmp.lt.s32.totalorder %s19, 5
          %s151 = scalar_select %p150, %s19, 5
          %p152 = scmp.lt.s32.totalorder %s20, 0
          %s153 = scalar_select %p152, %s20, 0
          %s154 = sadd.s32 %s153, %s151
          %s155 = smul.addr %s154, 8
          %s156 = scalar_lea.vmem %s0, %s155
        $region28: #{tpu_custom_call.1} parent=23 // pred_fallthru
          _
      $region24: #{tpu_custom_call.1} parent=5 // pred_fallthru
        _
      %p157 = scmp.le.s32.totalorder 1, %s12
      %p158 = scmp.lt.s32.totalorder %s12, 7
      %p159 = pnand %p157, %p158
      %p160 = pneg %p159
      // Predicated region
      $region29: #{tpu_custom_call.1} parent=5 // pred_check
        _
      $region30: #{tpu_custom_call.1} parent=5 // pred_check_branch
        %162 = sbr.rel (%p159) target = $region32
      $region31: #{tpu_custom_call.1} parent=5 // pred_region
        %s163 = ssub.s32 %s12, 1
        %p164 = scmp.lt.s32.totalorder %s21, 5
        %s165 = scalar_select %p164, %s21, 5
        %p166 = scmp.lt.s32.totalorder %s22, 0
        %s167 = scalar_select %p166, %s22, 0
        %s168 = sadd.s32 %s167, %s165
        %s169 = smul.addr %s168, 8
        %s170 = scalar_lea.vmem %s0, %s169
        %p171 = pneg %p52
        %p172 = pneg %p49
        %p173 = pneg %p73
        %p174 = pneg %p70
        %p175 = pneg %p94
        %p176 = pneg %p91
        %p177 = pneg %p122
        %p178 = pneg %p119
        %s179 = sand.u32 %s109, 1
        %s180 = scalar_lea.sflag [#allocation3], %s179
        %s181 = sand.u32 %s109, 1
        %s182 = smul.addr %s181, 8
        %s183 = scalar_lea.vmem [#allocation2], %s182
        %p184 = scmp.lt.s32.totalorder %s21, 5
        %s185 = scalar_select %p184, %s21, 5
        %p186 = scmp.lt.s32.totalorder %s22, 0
        %s187 = scalar_select %p186, %s22, 0
        %s188 = sadd.s32 %s187, %s185
        %s189 = smul.addr %s188, 8
        %s190 = scalar_lea.vmem %s0, %s189
        %v191 = vld [vmem:[%s190] sm:$0x3f]
        %v192 = vld [vmem:[%s1] sm:$0x1f]
        %v193 = vld [vmem:[%s2] sm:$0x1]
        %v195 = vlaneseq
        %v196 = vshrl.u32 %v195, 7
        %v197 = vsub.s32 0, %v196
        %v198 = vrot.slane %v193, %v197
        %vm200 = vcmask 39936
        %v202 = vsel %vm200, %v191, 0
        %vm204 = vcmask 1044480
        %v206 = vsel %vm204, %v192, 0
        %208 = vmatprep.subr.mxu0 0.0
        %209 = vmatpush1.msra.mxu0 %v206
        %210 = vmatprep.subr.mxu0 0.0
        %211 = vmatpush1.msra.mxu0 0.0
        %212 = vmatprep.subr.mxu0 0.0
        %213 = vmatpush1.msra.mxu0 0.0
        %214 = vmatprep.subr.mxu0 0.0
        %215 = vmatpush1.msra.mxu0 0.0
        %216 = vmatprep.subr.mxu0 0.0
        %217 = vmatpush1.msra.mxu0 0.0
        %218 = vmatprep.subr.mxu0 0.0
        %219 = vmatpush1.msra.mxu0 0.0
        %220 = vmatprep.subr.mxu0 0.0
        %221 = vmatpush1.msra.mxu0 0.0
        %222 = vmatprep.subr.mxu0 0.0
        %223 = vmatpush1.msra.mxu0 0.0
        %224 = vmatprep.subr.mxu0 0.0
        %225 = vmatpush1.msra.mxu0 0.0
        %226 = vmatprep.subr.mxu0 0.0
        %227 = vmatpush1.msra.mxu0 0.0
        %228 = vmatprep.subr.mxu0 0.0
        %229 = vmatpush1.msra.mxu0 0.0
        %230 = vmatprep.subr.mxu0 0.0
        %231 = vmatpush1.msra.mxu0 0.0
        %232 = vmatprep.subr.mxu0 0.0
        %233 = vmatpush1.msra.mxu0 0.0
        %234 = vmatprep.subr.mxu0 0.0
        %235 = vmatpush1.msra.mxu0 0.0
        %236 = vmatprep.subr.mxu0 0.0
        %237 = vmatpush1.msra.mxu0 0.0
        %238 = vmatprep.subr.mxu0 0.0
        %239 = vmatpush1.msra.mxu0 0.0
        %240 = vmatprep.subr.mxu0 0.0
        %241 = vmatpush1.msra.mxu0 0.0
        %242 = vmatprep.subr.mxu0 0.0
        %243 = vmatpush1.msra.mxu0 0.0
        %244 = vmatprep.subr.mxu0 0.0
        %245 = vmatpush1.msra.mxu0 0.0
        %246 = vmatprep.subr.mxu0 0.0
        %247 = vmatpush1.msra.mxu0 0.0
        %248 = vmatprep.subr.mxu0 0.0
        %249 = vmatpush1.msra.mxu0 0.0
        %250 = vmatprep.subr.mxu0 0.0
        %251 = vmatpush1.msra.mxu0 0.0
        %252 = vmatprep.subr.mxu0 0.0
        %253 = vmatpush1.msra.mxu0 0.0
        %254 = vmatprep.subr.mxu0 0.0
        %255 = vmatpush1.msra.mxu0 0.0
        %256 = vmatprep.subr.mxu0 0.0
        %257 = vmatpush1.msra.mxu0 0.0
        %258 = vmatprep.subr.mxu0 0.0
        %259 = vmatpush1.msra.mxu0 0.0
        %260 = vmatprep.subr.mxu0 0.0
        %261 = vmatpush1.msra.mxu0 0.0
        %262 = vmatprep.subr.mxu0 0.0
        %263 = vmatpush1.msra.mxu0 0.0
        %264 = vmatprep.subr.mxu0 0.0
        %265 = vmatpush1.msra.mxu0 0.0
        %266 = vmatprep.subr.mxu0 0.0
        %267 = vmatpush1.msra.mxu0 0.0
        %268 = vmatprep.subr.mxu0 0.0
        %269 = vmatpush1.msra.mxu0 0.0
        %270 = vmatprep.subr.mxu0 0.0
        %271 = vmatpush1.msra.mxu0 0.0
        %272 = vmatprep.mubr.f32.mxu0 0.0
        %273 = vmatmul.mubr.f32.gmra.mrb[0].mxu0 %v202
        %v274 = vpop.f32.mrb[0].mxu0
        %v275 = vadd.f32 %v198, %v274
        %v276 = vpop.f32.mrb[0].mxu0
        %277 = vdwg.mxu0
        %vm278 = vcmp.ge.f32.partialorder %v275, 0.0
        %v279 = vmul.f32 %v275, 0.1
        %v280 = vsel %vm278, %v275, %v279
        %281 = vst [vmem:[%s183] sm:$0x3f] %v280
        %s282 = sand.u32 %s109, 1
        %s283 = scalar_lea.sflag [#allocation3], %s282
        %s284 = sand.u32 %s109, 1
        %s285 = smul.addr %s284, 8
        %s286 = scalar_lea.vmem [#allocation2], %s285
        // Predicated region
        $region33: #{tpu_custom_call.1} parent=31 // pred_check
          %p287 = pneg %p119
        $region34: #{tpu_custom_call.1} parent=31 // pred_check_branch
          %289 = sbr.rel (%p287) target = $region36
        $region35: #{tpu_custom_call.1} parent=31 // pred_region
          %s291 = ssub.s32 128, 128
          %292 = vsyncadd %s283, %s291
          %s293 = sadd.s32 %s22, %s21
          %s294 = smul.addr %s293, 128
          %s295 = scalar_lea.hbm %s3, %s294
          %s297 = sshll.u32 %s286, 4
          %s298 = int_to_ptr.vmem [resolvable:$true] %s297
          %300 = dma.vmem_to_hbm [thread:$0]  %s298, 128, %s295, %s283
        $region36: #{tpu_custom_call.1} parent=31 // pred_fallthru
          _
      $region32: #{tpu_custom_call.1} parent=5 // pred_fallthru
        _
      %p301 = scmp.le.s32.totalorder 2, %s12
      // Predicated region
      $region37: #{tpu_custom_call.1} parent=5 // pred_check
        %p302 = pneg %p301
      $region38: #{tpu_custom_call.1} parent=5 // pred_check_branch
        %304 = sbr.rel (%p302) target = $region40
      $region39: #{tpu_custom_call.1} parent=5 // pred_region
        %s305 = ssub.s32 %s12, 2
        // Predicated region
        $region41: #{tpu_custom_call.1} parent=39 // pred_check
          %p306 = pneg %p125
        $region42: #{tpu_custom_call.1} parent=39 // pred_check_branch
          %308 = sbr.rel (%p306) target = $region44
        $region43: #{tpu_custom_call.1} parent=39 // pred_region
          %s309 = sand.u32 %s110, 1
          %s310 = scalar_lea.sflag [#allocation3], %s309
          %s311 = sand.u32 %s110, 1
          %s312 = smul.addr %s311, 8
          %s313 = scalar_lea.vmem [#allocation2], %s312
          %314 = dma.done %s310, 128
        $region44: #{tpu_custom_call.1} parent=39 // pred_fallthru
          _
      $region40: #{tpu_custom_call.1} parent=5 // pred_fallthru
        _
    $region6: #{tpu_custom_call.1} parent=1 // loop_footer
      %s16 = sadd.s32 1, %s12
    $region7: #{tpu_custom_call.1} parent=1 // loop_footer_branch
      %11 = sbr.rel target = $region3
    $region8: #{tpu_custom_call.1} parent=1 // loop_exit
      _
    %315 = vsyncpa [#allocation3], 1
    %s316 = scalar_lea.sflag [#allocation3], 1
    %317 = vsyncpa %s316, 1

</llo_original>
